<compile_context>
chip_gen: v7x
topology: tpu7x:2x2x1
jax: 0.10.0
libtpu: 0.0.40
codegen_flags: <defaults>
</compile_context>

<pallas_src>
import jax
import jax.numpy as jnp
from jax.experimental import pallas as pl
from jax.experimental.pallas import tpu as pltpu


def _make_kernel(out_h, out_w, align_corners=False):
    H, W = int(out_h), int(out_w)
    if align_corners:
        x_scale = 0.0 if W == 1 else 2.0 / (W - 1)
        y_scale = 0.0 if H == 1 else 2.0 / (H - 1)
        x_off, y_off = -1.0, -1.0
    else:
        x_scale, x_off = 2.0 / W, 1.0 / W - 1.0
        y_scale, y_off = 2.0 / H, 1.0 / H - 1.0

    def kernel(theta_ref, out_ref):
        # theta_ref: (bb, 1, 6) = [t00 t01 t02 t10 t11 t12] per batch row
        # out_ref  : (bb, th, 2W) block of the interleaved grid
        #            (even lanes = x channel, odd lanes = y channel)
        _, th, tw = out_ref.shape

        # ---- per-tile lane basis (amortized over all bb*th rows) ----------
        lane = jax.lax.broadcasted_iota(jnp.int32, (1, 1, tw), 2)
        is_x = (lane & 1) == 0                          # lane parity -> channel
        col = (lane >> 1).astype(jnp.float32)           # pixel column j
        xn = col * jnp.float32(x_scale) + jnp.float32(x_off)        # (1,1,tw)

        t = theta_ref[...].astype(jnp.float32)                      # (bb,1,6)
        a = jnp.where(is_x, t[:, :, 0:1], t[:, :, 3:4])             # (bb,1,tw)
        b = jnp.where(is_x, t[:, :, 1:2], t[:, :, 4:5])             # (bb,1,tw)
        c = jnp.where(is_x, t[:, :, 2:3], t[:, :, 5:6])             # (bb,1,tw)
        p = a * xn + c                                               # (bb,1,tw)

        # ---- per-tile row coordinate (sublane iota, no divide/floor) ------
        row = (jax.lax.broadcasted_iota(jnp.int32, (1, th, 1), 1)
               + th * pl.program_id(1))                              # (1,th,1)
        yn = row.astype(jnp.float32) * jnp.float32(y_scale) + jnp.float32(y_off)

        # ---- main tile: ~1 mul + 1 add per output element -----------------
        out_ref[...] = (b * yn + p).astype(out_ref.dtype)

    return kernel


def _choose_block(B, H, tw, elem_bytes=4, target_bytes=2 << 20):
    """Pick (bb, th): batch rows and image rows per block.

    Block is (bb, th, 2W); th is the full H or a multiple of 8 (BlockSpec
    legal), blocks target ~2 MiB, and when there is meaningful work we keep
    >= 2 grid steps so megacore can split it.  Ragged boundary blocks are
    left to Pallas masking (no padding).
    """
    row_bytes = tw * elem_bytes
    img_bytes = H * row_bytes

    if img_bytes <= target_bytes or H <= 8:
        th = H
    else:
        max_rows = max(8, (target_bytes // row_bytes) // 8 * 8)
        max_rows = min(max_rows, (H // 8) * 8)
        th = max_rows
        if H % 8 == 0:
            while H % th != 0:          # exact divisor -> no ragged H blocks
                th -= 8

    if th == H:
        bb = min(B, max(1, target_bytes // max(img_bytes, 1)))
    else:
        bb = 1

    # Keep >= 2 parallel grid steps when there is enough work to matter.
    steps = pl.cdiv(B, bb) * pl.cdiv(H, th)
    if steps < 2 and B * img_bytes > (512 << 10):
        if B > 1:
            bb = (B + 1) // 2
        elif H % 16 == 0:
            th = H // 2
    return bb, th


def affine_grid_gen(theta, out_h=16, out_w=16, out_ch=3, align_corners=False,
                    dtype=jnp.float32):
    """Pallas equivalent of AffineGridGen(out_h, out_w, out_ch).forward(theta).

    theta: (B, 2, 3) float -> grid: (B, out_h, out_w, 2).
    out_ch never changes the grid returned by F.affine_grid -> unused.
    """
    assert theta.ndim == 3 and theta.shape[1:] == (2, 3), theta.shape
    B = int(theta.shape[0])
    H, W = int(out_h), int(out_w)
    tw = 2 * W                                  # interleaved x/y lane extent

    # (B,1,6) so the theta block's last two dims equal the full array dims
    # (BlockSpec-legal for any bb).
    theta6 = theta.reshape(B, 1, 6).astype(jnp.float32)

    elem_bytes = jnp.dtype(dtype).itemsize
    bb, th = _choose_block(B, H, tw, elem_bytes=elem_bytes)
    grid = (pl.cdiv(B, bb), pl.cdiv(H, th))

    tile_bytes = bb * th * tw * elem_bytes
    vmem_limit = int(min(48 << 20, max(32 << 20, 3 * tile_bytes)))

    out = pl.pallas_call(
        _make_kernel(H, W, align_corners),
        out_shape=jax.ShapeDtypeStruct((B, H, tw), dtype),
        grid=grid,
        in_specs=[pl.BlockSpec((bb, 1, 6), lambda i, j: (i, 0, 0))],
        out_specs=pl.BlockSpec((bb, th, tw), lambda i, j: (i, j, 0)),
        compiler_params=pltpu.CompilerParams(
            dimension_semantics=("parallel", "parallel"),
            vmem_limit_bytes=vmem_limit),
    )(theta6)

    # (B, H, 2W) row-major == (B, H, W, 2) row-major -> free reshape,
    # no transpose, no post-kernel slice.
    return out.reshape(B, H, W, 2)


def _reference_affine_grid(theta, out_h, out_w):
    """Pure-JAX reference (align_corners=False), for validation."""
    x = (2.0 * jnp.arange(out_w, dtype=jnp.float32) + 1.0) / out_w - 1.0
    y = (2.0 * jnp.arange(out_h, dtype=jnp.float32) + 1.0) / out_h - 1.0
    xn, yn = jnp.meshgrid(x, y)                              # (H, W) each
    base = jnp.stack([xn, yn, jnp.ones_like(xn)], axis=-1)   # (H, W, 3)
    return jnp.einsum("bkm,ijm->bijk", theta.astype(jnp.float32), base)


if __name__ == "__main__":
    key = jax.random.PRNGKey(0)

    # Primary small example: batch=2, 16x16 grid.
    B, out_h, out_w, out_ch = 2, 16, 16, 3
    ident = jnp.tile(jnp.array([[1.0, 0.0, 0.0],
                                [0.0, 1.0, 0.0]], dtype=jnp.float32), (B, 1, 1))
    theta = ident + 0.1 * jax.random.normal(key, (B, 2, 3), dtype=jnp.float32)

    grid = jax.block_until_ready(
        affine_grid_gen(theta, out_h=out_h, out_w=out_w, out_ch=out_ch))
    assert grid.shape == (B, out_h, out_w, 2), grid.shape
    ref = _reference_affine_grid(theta, out_h, out_w)
    assert jnp.allclose(grid, ref, atol=1e-5, rtol=1e-5)

    # Exercises multi-batch blocks with a ragged last batch block (26 % 10 != 0).
    B2, h2, w2 = 26, 160, 160
    theta2 = 0.2 * jax.random.normal(jax.random.PRNGKey(0), (B2, 2, 3),
                                     dtype=jnp.float32)
    grid2 = jax.block_until_ready(affine_grid_gen(theta2, out_h=h2, out_w=w2))
    assert grid2.shape == (B2, h2, w2, 2), grid2.shape
    ref2 = _reference_affine_grid(theta2, h2, w2)
    assert jnp.allclose(grid2, ref2, atol=1e-5, rtol=1e-5)

    # Exercises H-axis tiling with a ragged last row block (250 % 216 != 0).
    B3, h3, w3 = 2, 250, 1200
    theta3 = 0.2 * jax.random.normal(jax.random.PRNGKey(0), (B3, 2, 3),
                                     dtype=jnp.float32)
    grid3 = jax.block_until_ready(affine_grid_gen(theta3, out_h=h3, out_w=w3))
    assert grid3.shape == (B3, h3, w3, 2), grid3.shape
    ref3 = _reference_affine_grid(theta3, h3, w3)
    assert jnp.allclose(grid3, ref3, atol=1e-5, rtol=1e-5)

    print("KERNEL_OK")
</pallas_src>

<mosaic_0001>
module attributes {stable_mosaic.version = 11 : i64} {
  func.func @kernel(%arg0: i32, %arg1: i32, %arg2: memref<2x1x6xf32, #tpu.memory_space<vmem>>, %arg3: memref<2x16x32xf32, #tpu.memory_space<vmem>>) attributes {dimension_semantics = [#tpu.dimension_semantics<parallel>, #tpu.dimension_semantics<parallel>], iteration_bounds = array<i64: 1, 1>, scalar_prefetch = 0 : i64, scratch_operands = 0 : i64, tpu.core_type = #tpu.core_type<tc>, window_params = [{transform_indices = @transform_0, window_bounds = array<i64: 2, 1, 6>}, {transform_indices = @transform_1, window_bounds = array<i64: 2, 16, 32>}]} {
    %0 = tpu.iota {dimensions = array<i32: 2>} : vector<1x1x32xi32>
    %c1_i32 = arith.constant 1 : i32
    %1 = vector.broadcast %c1_i32 : i32 to vector<1x1x32xi32>
    %2 = arith.andi %0, %1 : vector<1x1x32xi32>
    %c0_i32 = arith.constant 0 : i32
    %3 = vector.broadcast %c0_i32 : i32 to vector<1x1x32xi32>
    %4 = arith.cmpi eq, %2, %3 : vector<1x1x32xi32>
    %c1_i32_0 = arith.constant 1 : i32
    %5 = vector.broadcast %c1_i32_0 : i32 to vector<1x1x32xi32>
    %6 = arith.shrsi %0, %5 : vector<1x1x32xi32>
    %7 = arith.sitofp %6 : vector<1x1x32xi32> to vector<1x1x32xf32>
    %cst = arith.constant 1.250000e-01 : f32
    %8 = vector.broadcast %cst : f32 to vector<1x1x32xf32>
    %9 = arith.mulf %7, %8 : vector<1x1x32xf32>
    %cst_1 = arith.constant -9.375000e-01 : f32
    %10 = vector.broadcast %cst_1 : f32 to vector<1x1x32xf32>
    %11 = arith.addf %9, %10 : vector<1x1x32xf32>
    %c0 = arith.constant 0 : index
    %c0_2 = arith.constant 0 : index
    %c0_3 = arith.constant 0 : index
    %12 = vector.load %arg2[%c0, %c0_2, %c0_3] : memref<2x1x6xf32, #tpu.memory_space<vmem>>, vector<2x1x6xf32>
    %13 = vector.extract_strided_slice %12 {offsets = [0, 0, 0], sizes = [2, 1, 1], strides = [1, 1, 1]} : vector<2x1x6xf32> to vector<2x1x1xf32>
    %14 = vector.extract_strided_slice %12 {offsets = [0, 0, 3], sizes = [2, 1, 1], strides = [1, 1, 1]} : vector<2x1x6xf32> to vector<2x1x1xf32>
    %15 = vector.shape_cast %4 : vector<1x1x32xi1> to vector<1x1x32xi1>
    %16 = vector.broadcast %15 : vector<1x1x32xi1> to vector<2x1x32xi1>
    %17 = vector.shape_cast %13 : vector<2x1x1xf32> to vector<2x1x1xf32>
    %18 = vector.broadcast %17 : vector<2x1x1xf32> to vector<2x1x32xf32>
    %19 = vector.shape_cast %14 : vector<2x1x1xf32> to vector<2x1x1xf32>
    %20 = vector.broadcast %19 : vector<2x1x1xf32> to vector<2x1x32xf32>
    %21 = arith.select %16, %18, %20 : vector<2x1x32xi1>, vector<2x1x32xf32>
    %22 = vector.extract_strided_slice %12 {offsets = [0, 0, 1], sizes = [2, 1, 1], strides = [1, 1, 1]} : vector<2x1x6xf32> to vector<2x1x1xf32>
    %23 = vector.extract_strided_slice %12 {offsets = [0, 0, 4], sizes = [2, 1, 1], strides = [1, 1, 1]} : vector<2x1x6xf32> to vector<2x1x1xf32>
    %24 = vector.shape_cast %4 : vector<1x1x32xi1> to vector<1x1x32xi1>
    %25 = vector.broadcast %24 : vector<1x1x32xi1> to vector<2x1x32xi1>
    %26 = vector.shape_cast %22 : vector<2x1x1xf32> to vector<2x1x1xf32>
    %27 = vector.broadcast %26 : vector<2x1x1xf32> to vector<2x1x32xf32>
    %28 = vector.shape_cast %23 : vector<2x1x1xf32> to vector<2x1x1xf32>
    %29 = vector.broadcast %28 : vector<2x1x1xf32> to vector<2x1x32xf32>
    %30 = arith.select %25, %27, %29 : vector<2x1x32xi1>, vector<2x1x32xf32>
    %31 = vector.extract_strided_slice %12 {offsets = [0, 0, 2], sizes = [2, 1, 1], strides = [1, 1, 1]} : vector<2x1x6xf32> to vector<2x1x1xf32>
    %32 = vector.extract_strided_slice %12 {offsets = [0, 0, 5], sizes = [2, 1, 1], strides = [1, 1, 1]} : vector<2x1x6xf32> to vector<2x1x1xf32>
    %33 = vector.shape_cast %4 : vector<1x1x32xi1> to vector<1x1x32xi1>
    %34 = vector.broadcast %33 : vector<1x1x32xi1> to vector<2x1x32xi1>
    %35 = vector.shape_cast %31 : vector<2x1x1xf32> to vector<2x1x1xf32>
    %36 = vector.broadcast %35 : vector<2x1x1xf32> to vector<2x1x32xf32>
    %37 = vector.shape_cast %32 : vector<2x1x1xf32> to vector<2x1x1xf32>
    %38 = vector.broadcast %37 : vector<2x1x1xf32> to vector<2x1x32xf32>
    %39 = arith.select %34, %36, %38 : vector<2x1x32xi1>, vector<2x1x32xf32>
    %40 = vector.broadcast %11 : vector<1x1x32xf32> to vector<2x1x32xf32>
    %41 = arith.mulf %21, %40 : vector<2x1x32xf32>
    %42 = arith.addf %41, %39 : vector<2x1x32xf32>
    %43 = tpu.iota {dimensions = array<i32: 1>} : vector<1x16x1xi32>
    %c16_i32 = arith.constant 16 : i32
    %44 = arith.muli %c16_i32, %arg1 : i32
    %45 = vector.broadcast %44 : i32 to vector<1x16x1xi32>
    %46 = arith.addi %43, %45 : vector<1x16x1xi32>
    %47 = arith.sitofp %46 : vector<1x16x1xi32> to vector<1x16x1xf32>
    %cst_4 = arith.constant 1.250000e-01 : f32
    %48 = vector.broadcast %cst_4 : f32 to vector<1x16x1xf32>
    %49 = arith.mulf %47, %48 : vector<1x16x1xf32>
    %cst_5 = arith.constant -9.375000e-01 : f32
    %50 = vector.broadcast %cst_5 : f32 to vector<1x16x1xf32>
    %51 = arith.addf %49, %50 : vector<1x16x1xf32>
    %52 = vector.broadcast %30 : vector<2x1x32xf32> to vector<2x16x32xf32>
    %53 = vector.broadcast %51 : vector<1x16x1xf32> to vector<2x16x32xf32>
    %54 = arith.mulf %52, %53 : vector<2x16x32xf32>
    %55 = vector.broadcast %42 : vector<2x1x32xf32> to vector<2x16x32xf32>
    %56 = arith.addf %54, %55 : vector<2x16x32xf32>
    %c0_6 = arith.constant 0 : index
    %c0_7 = arith.constant 0 : index
    %c0_8 = arith.constant 0 : index
    %57 = vector.load %arg3[%c0_6, %c0_7, %c0_8] : memref<2x16x32xf32, #tpu.memory_space<vmem>>, vector<2x16x32xf32>
    tpu.vector_store %arg3[%c0_6, %c0_7, %c0_8], %56 {strides = array<i32>} : memref<2x16x32xf32, #tpu.memory_space<vmem>>, vector<2x16x32xf32>,
    return
  }
  func.func @transform_0(%arg0: i32, %arg1: i32) -> (i32, i32, i32) {
    %c0_i32 = arith.constant 0 : i32
    %c0_i32_0 = arith.constant 0 : i32
    %c0_i32_1 = arith.constant 0 : i32
    return %arg0, %c0_i32, %c0_i32_0 : i32, i32, i32
  }
  func.func @transform_1(%arg0: i32, %arg1: i32) -> (i32, i32, i32) {
    %c0_i32 = arith.constant 0 : i32
    %c0_i32_0 = arith.constant 0 : i32
    return %arg0, %arg1, %c0_i32 : i32, i32, i32
  }
}

</mosaic_0001>

<llo_original>
// kernel: tpu_custom_call.1
$region0: #{tpu_custom_call.1}
  #allocation0 [shape = 'u32[]', space=smem, size = 0x4, offset = 0x4, fixed_abs, tag = 'smem constant byte address 0x4 - core index']
  #allocation1 [shape = 'u32[144,128]{1,0:T(1,128)}', space=vmem, size = 0x12000, scoped, tag = 'internal scratch']
  %s0 = inlined_call_operand.hbm [shape: f32[2,1,6], index: 0, kind: input, shape index: {}]
  %s1 = inlined_call_operand.hbm [shape: f32[2,16,32], index: 1, kind: output, shape index: {}]
  %s2 = sld [smem:[#allocation0]]
  $region18: #{tpu_custom_call.1} parent=0
    _
  %s4 = ssub.s32 1, %s2
  %s5 = scalar_select 0, %s4, %s2
  $region1: #{tpu_custom_call.1} parent=0
    #allocation2 [shape = 'u8[1024]{0}', space=vmem, size = 0x400, scoped, tag = 'input window, operand 0, single buffered']
    #allocation3 [shape = 's32[1]{0}', space=sflag, size = 0x4, scoped, tag = 'scoped memory for tpu_custom_call.1']
    #allocation4 [shape = 's32[1]{0}', space=sflag, size = 0x4, scoped, tag = 'scoped memory for tpu_custom_call.1']
    #allocation5 [shape = 'u8[16384]{0}', space=vmem, size = 0x4000, scoped, tag = 'output window, operand 0, single buffered']
    %6 = vsyncpa [#allocation3], 0
    %7 = vsyncpa [#allocation4], 0
    // Predicated region
    $region2: #{tpu_custom_call.1} parent=1 // pred_check
      _
    $region3: #{tpu_custom_call.1} parent=1 // pred_check_branch
      %9 = sbr.rel (0) target = $region5
    $region4: #{tpu_custom_call.1} parent=1 // pred_region
      %s11 = ssub.s32 32, 32
      %12 = vsyncadd [#allocation3], %s11
      %s13 = sshll.u32 [#allocation2], 4
      %s14 = int_to_ptr.vmem [resolvable:$true] %s13
      %19 = dma.hbm_to_vmem [thread:$0]  %s0, 32, %s14, [#allocation3], 16, 16, 1
    $region5: #{tpu_custom_call.1} parent=1 // pred_fallthru
      _
    // Predicated region
    $region6: #{tpu_custom_call.1} parent=1 // pred_check
      _
    $region7: #{tpu_custom_call.1} parent=1 // pred_check_branch
      %21 = sbr.rel (0) target = $region9
    $region8: #{tpu_custom_call.1} parent=1 // pred_region
      %22 = dma.done [#allocation3], 32
    $region9: #{tpu_custom_call.1} parent=1 // pred_fallthru
      _
    %v23 = vlaneseq
    %v24 = vand.u32 %v23, 127
    %v25 = vand.u32 %v24, 1
    %vm26 = vcmp.eq.s32.totalorder %v25, 0
    %v27 = vshra.s32 %v24, 1
    %v28 = vcvt.s32.f32 %v27
    %v29 = vmul.f32 %v28, 0.125
    %v30 = vadd.f32 %v29, -0.9375
    %v31 = vld [vmem:[#allocation2] sm:$0x1]
    %v32 = vld [vmem:[#allocation2 + $0x1] sm:$0x1]
    %v33 = vsel %vm26, 1, 0
    %vm34 = vcmp.eq.s32.totalorder %v33, 1
    %36 = vset.pattern.permute.xlu0 0
    %37 = vperm.xlu0 %36, %v31
    %v38 = vpop.permute.xlu0 %37
    %v40 = vlaneseq
    %v41 = vshrl.u32 %v40, 7
    %v42 = vsub.s32 0, %v41
    %v43 = vrot.slane %v38, %v42
    %45 = vset.pattern.permute.xlu0 0
    %46 = vperm.xlu0 %45, %v32
    %v47 = vpop.permute.xlu0 %46
    %v49 = vlaneseq
    %v50 = vshrl.u32 %v49, 7
    %v51 = vsub.s32 0, %v50
    %v52 = vrot.slane %v47, %v51
    %53 = vset.pattern.permute.xlu0 3
    %54 = vperm.xlu0 %53, %v31
    %v55 = vpop.permute.xlu0 %54
    %v57 = vlaneseq
    %v58 = vshrl.u32 %v57, 7
    %v59 = vsub.s32 0, %v58
    %v60 = vrot.slane %v55, %v59
    %61 = vset.pattern.permute.xlu0 3
    %62 = vperm.xlu0 %61, %v32
    %v63 = vpop.permute.xlu0 %62
    %v65 = vlaneseq
    %v66 = vshrl.u32 %v65, 7
    %v67 = vsub.s32 0, %v66
    %v68 = vrot.slane %v63, %v67
    %v69 = vsel %vm34, %v43, %v60
    %v70 = vsel %vm34, %v52, %v68
    %71 = vset.pattern.permute.xlu0 1
    %72 = vperm.xlu0 %71, %v31
    %v73 = vpop.permute.xlu0 %72
    %v75 = vlaneseq
    %v76 = vshrl.u32 %v75, 7
    %v77 = vsub.s32 0, %v76
    %v78 = vrot.slane %v73, %v77
    %79 = vset.pattern.permute.xlu0 1
    %80 = vperm.xlu0 %79, %v32
    %v81 = vpop.permute.xlu0 %80
    %v83 = vlaneseq
    %v84 = vshrl.u32 %v83, 7
    %v85 = vsub.s32 0, %v84
    %v86 = vrot.slane %v81, %v85
    %87 = vset.pattern.permute.xlu0 4
    %88 = vperm.xlu0 %87, %v31
    %v89 = vpop.permute.xlu0 %88
    %v91 = vlaneseq
    %v92 = vshrl.u32 %v91, 7
    %v93 = vsub.s32 0, %v92
    %v94 = vrot.slane %v89, %v93
    %95 = vset.pattern.permute.xlu0 4
    %96 = vperm.xlu0 %95, %v32
    %v97 = vpop.permute.xlu0 %96
    %v99 = vlaneseq
    %v100 = vshrl.u32 %v99, 7
    %v101 = vsub.s32 0, %v100
    %v102 = vrot.slane %v97, %v101
    %v103 = vsel %vm34, %v78, %v94
    %v104 = vsel %vm34, %v86, %v102
    %105 = vset.pattern.permute.xlu0 2
    %106 = vperm.xlu0 %105, %v31
    %v107 = vpop.permute.xlu0 %106
    %v109 = vlaneseq
    %v110 = vshrl.u32 %v109, 7
    %v111 = vsub.s32 0, %v110
    %v112 = vrot.slane %v107, %v111
    %113 = vset.pattern.permute.xlu0 2
    %114 = vperm.xlu0 %113, %v32
    %v115 = vpop.permute.xlu0 %114
    %v117 = vlaneseq
    %v118 = vshrl.u32 %v117, 7
    %v119 = vsub.s32 0, %v118
    %v120 = vrot.slane %v115, %v119
    %121 = vset.pattern.permute.xlu0 5
    %122 = vperm.xlu0 %121, %v31
    %v123 = vpop.permute.xlu0 %122
    %v125 = vlaneseq
    %v126 = vshrl.u32 %v125, 7
    %v127 = vsub.s32 0, %v126
    %v128 = vrot.slane %v123, %v127
    %129 = vset.pattern.permute.xlu0 5
    %130 = vperm.xlu0 %129, %v32
    %v131 = vpop.permute.xlu0 %130
    %v133 = vlaneseq
    %v134 = vshrl.u32 %v133, 7
    %v135 = vsub.s32 0, %v134
    %v136 = vrot.slane %v131, %v135
    %v137 = vsel %vm34, %v112, %v128
    %v138 = vsel %vm34, %v120, %v136
    %v139 = vmul.f32 %v69, %v30
    %v140 = vmul.f32 %v70, %v30
    %v141 = vadd.f32 %v139, %v137
    %v142 = vadd.f32 %v140, %v138
    %v143 = vlaneseq
    %v144 = vshrl.u32 %v143, 7
    %v145 = vadd.s32 %v144, 8
    %s146 = smul.u32 0, 16
    %v147 = vstv %s146
    %v148 = vadd.s32 %v144, %v147
    %v149 = vadd.s32 %v145, %v147
    %v150 = vcvt.s32.f32 %v148
    %v151 = vcvt.s32.f32 %v149
    %v152 = vmul.f32 %v150, 0.125
    %v153 = vmul.f32 %v151, 0.125
    %v154 = vadd.f32 %v152, -0.9375
    %v155 = vadd.f32 %v153, -0.9375
    %v156 = vmul.f32 %v103, %v154
    %v157 = vmul.f32 %v103, %v155
    %v158 = vmul.f32 %v104, %v154
    %v159 = vmul.f32 %v104, %v155
    %v160 = vadd.f32 %v156, %v141
    %v161 = vadd.f32 %v157, %v141
    %v162 = vadd.f32 %v158, %v142
    %v163 = vadd.f32 %v159, %v142
    %vm164 = vcmask 261120
    %165 = vst.msk [vmem:[#allocation5] sm:$0xff] %vm164, %v160
    %166 = vst.msk [vmem:[#allocation5 + $0x8] sm:$0xff] %vm164, %v161
    %167 = vst.msk [vmem:[#allocation5 + $0x10] sm:$0xff] %vm164, %v162
    %168 = vst.msk [vmem:[#allocation5 + $0x18] sm:$0xff] %vm164, %v163
    // Predicated region
    $region10: #{tpu_custom_call.1} parent=1 // pred_check
      _
    $region11: #{tpu_custom_call.1} parent=1 // pred_check_branch
      %170 = sbr.rel (0) target = $region13
    $region12: #{tpu_custom_call.1} parent=1 // pred_region
      %s172 = ssub.s32 512, 512
      %173 = vsyncadd [#allocation4], %s172
      %s174 = sshll.u32 [#allocation5], 4
      %s175 = int_to_ptr.vmem [resolvable:$true] %s174
      %180 = dma.vmem_to_hbm [thread:$0]  %s175, 512, %s1, [#allocation4], 128, 128, 8
    $region13: #{tpu_custom_call.1} parent=1 // pred_fallthru
      _
    // Predicated region
    $region14: #{tpu_custom_call.1} parent=1 // pred_check
      _
    $region15: #{tpu_custom_call.1} parent=1 // pred_check_branch
      %182 = sbr.rel (0) target = $region17
    $region16: #{tpu_custom_call.1} parent=1 // pred_region
      %183 = dma.done [#allocation4], 512
    $region17: #{tpu_custom_call.1} parent=1 // pred_fallthru
      _
    %184 = vsyncpa [#allocation3], 1
    %185 = vsyncpa [#allocation4], 1

</llo_original>
